<compile_context>
chip_gen: v7x
topology: tpu7x:2x2x1
jax: 0.10.0
libtpu: 0.0.40
codegen_flags: <defaults>
</compile_context>

<pallas_src>
import jax
import jax.numpy as jnp
import numpy as np
from jax.experimental import pallas as pl
from jax.experimental.pallas import tpu as pltpu


H_PAD = 128     # padded hidden size (one lane group)
O_PAD = 128     # padded output size (minimum lane-dense width)
VREG_BYTES = 4096


def rnn_kernel(xproj_ref, whh_ref, wfc_ref, bfc_ref, out_ref):
    # xproj_ref : (T, B, H_PAD)   precomputed x@W_ih + (b_ih+b_hh), time-major
    # whh_ref   : (H_PAD, H_PAD)  W_hh^T (zero padded)
    # wfc_ref   : (H_PAD, O_PAD)  fc weight^T (zero padded)
    # bfc_ref   : (1, O_PAD)      fc bias (zero padded)
    # out_ref   : (B, O_PAD)
    T, B, H = xproj_ref.shape

    # Hoist the loop-invariant recurrent-weight load out of the recurrence.
    whh = whh_ref[...]
    h = jnp.zeros((B, H), jnp.float32)

    # Small slab: keep the whole projection in vregs, fully unroll with static
    # indices so the LLO scheduler overlaps step t+1's tanh/adds with step t's
    # MXU latency.  Large slab: partially-unrolled fori_loop reading from VMEM.
    if T * B * H * 4 <= 40 * VREG_BYTES:
        xproj = xproj_ref[...]
        for t in range(T):
            h = jnp.tanh(xproj[t] +
                         jnp.dot(h, whh, preferred_element_type=jnp.float32))
    else:
        def step(t, h):
            pre = xproj_ref[t] + jnp.dot(h, whh,
                                         preferred_element_type=jnp.float32)
            return jnp.tanh(pre)
        h = jax.lax.fori_loop(0, T, step, h, unroll=min(int(T), 8))

    out_ref[...] = (jnp.dot(h, wfc_ref[...],
                            preferred_element_type=jnp.float32)
                    + bfc_ref[...])


def make_simple_rnn(w_ih, w_hh, b_ih, b_hh, w_fc, b_fc):
    """Pad/transpose torch-layout params once; return a jitted forward(x)."""
    H, I = w_ih.shape
    O = w_fc.shape[0]
    assert I == 1, "kernel exploits input_size == 1 (VPU broadcast projection)"
    assert H <= H_PAD and O <= O_PAD

    # One-time parameter packing (torch layouts -> padded TPU layouts).
    wih_row = jnp.zeros((H_PAD,), jnp.float32).at[:H].set(
        jnp.asarray(w_ih, jnp.float32)[:, 0])
    bias_row = jnp.zeros((H_PAD,), jnp.float32).at[:H].set(
        jnp.asarray(b_ih, jnp.float32) + jnp.asarray(b_hh, jnp.float32))
    whh_p = jnp.zeros((H_PAD, H_PAD), jnp.float32).at[:H, :H].set(
        jnp.asarray(w_hh, jnp.float32).T)
    wfc_p = jnp.zeros((H_PAD, O_PAD), jnp.float32).at[:H, :O].set(
        jnp.asarray(w_fc, jnp.float32).T)
    bfc_p = jnp.zeros((1, O_PAD), jnp.float32).at[0, :O].set(
        jnp.asarray(b_fc, jnp.float32))

    @jax.jit
    def forward(x):
        B, T, Ix = x.shape
        assert Ix == 1, "input feature dim must be 1"

        # Batch padding / tiling (all static under jit).  Whole batch in one
        # tile when it fits; 128-row "parallel" tiles otherwise (lets v7x use
        # both TensorCores and keeps the per-tile xproj block VMEM-bounded).
        b_pad = max(8, ((B + 7) // 8) * 8)
        if b_pad > 128:
            b_pad = ((b_pad + 127) // 128) * 128
            b_tile = 128
        else:
            b_tile = b_pad
        grid = (b_pad // b_tile,)

        # Hoisted input projection (input_size == 1 -> pure broadcast FMA).
        # Fuses with the transpose + pad into one XLA fusion; padded batch
        # rows and padded hidden lanes stay exactly zero.
        x_tm = jnp.transpose(x, (1, 0, 2)).astype(jnp.float32)    # (T, B, 1)
        xproj = x_tm * wih_row + bias_row                          # (T, B, H_PAD)
        if B == b_pad:
            xproj_p = xproj
        else:
            xproj_p = jnp.zeros((T, b_pad, H_PAD),
                                jnp.float32).at[:, :B, :].set(xproj)

        out_p = pl.pallas_call(
            rnn_kernel,
            out_shape=jax.ShapeDtypeStruct((b_pad, O_PAD), jnp.float32),
            grid=grid,
            in_specs=[
                pl.BlockSpec((T, b_tile, H_PAD), lambda i: (0, i, 0)),
                pl.BlockSpec((H_PAD, H_PAD), lambda i: (0, 0)),
                pl.BlockSpec((H_PAD, O_PAD), lambda i: (0, 0)),
                pl.BlockSpec((1, O_PAD), lambda i: (0, 0)),
            ],
            out_specs=pl.BlockSpec((b_tile, O_PAD), lambda i: (i, 0)),
            compiler_params=pltpu.CompilerParams(
                dimension_semantics=("parallel",)),
        )(xproj_p, whh_p, wfc_p, bfc_p)

        return out_p[:B, :O]

    return forward


def reference_forward(x, w_ih, w_hh, b_ih, b_hh, w_fc, b_fc):
    """Pure-JAX replica of torch nn.RNN + nn.Linear forward for verification."""
    B, T, I = x.shape
    H = w_hh.shape[0]
    h = jnp.zeros((B, H), jnp.float32)
    for t in range(T):
        h = jnp.tanh(x[:, t, :] @ w_ih.T + b_ih + h @ w_hh.T + b_hh)
    return h @ w_fc.T + b_fc


if __name__ == "__main__":
    input_size, hidden_size, output_size = 1, 10, 1
    batch, seq = 2, 8

    key = jax.random.PRNGKey(0)
    keys = jax.random.split(key, 7)
    k = 1.0 / np.sqrt(hidden_size)

    # Deterministic init mimicking torch's uniform(-1/sqrt(H), 1/sqrt(H)).
    w_ih = jax.random.uniform(keys[0], (hidden_size, input_size), jnp.float32, -k, k)
    w_hh = jax.random.uniform(keys[1], (hidden_size, hidden_size), jnp.float32, -k, k)
    b_ih = jax.random.uniform(keys[2], (hidden_size,), jnp.float32, -k, k)
    b_hh = jax.random.uniform(keys[3], (hidden_size,), jnp.float32, -k, k)
    w_fc = jax.random.uniform(keys[4], (output_size, hidden_size), jnp.float32, -k, k)
    b_fc = jax.random.uniform(keys[5], (output_size,), jnp.float32, -k, k)

    x = jax.random.normal(keys[6], (batch, seq, input_size), jnp.float32)

    forward = make_simple_rnn(w_ih, w_hh, b_ih, b_hh, w_fc, b_fc)
    out = jax.block_until_ready(forward(x))

    ref = reference_forward(x, w_ih, w_hh, b_ih, b_hh, w_fc, b_fc)
    np.testing.assert_allclose(np.asarray(out), np.asarray(ref),
                               rtol=1e-5, atol=1e-5)
    assert out.shape == (batch, output_size)
    print("KERNEL_OK")
</pallas_src>

<mosaic_0001>
module attributes {stable_mosaic.version = 11 : i64} {
  func.func @rnn_kernel(%arg0: i32, %arg1: memref<8x8x128xf32, #tpu.memory_space<vmem>>, %arg2: memref<128x128xf32, #tpu.memory_space<vmem>>, %arg3: memref<128x128xf32, #tpu.memory_space<vmem>>, %arg4: memref<1x128xf32, #tpu.memory_space<vmem>>, %arg5: memref<8x128xf32, #tpu.memory_space<vmem>>) attributes {dimension_semantics = [#tpu.dimension_semantics<parallel>], iteration_bounds = array<i64: 1>, scalar_prefetch = 0 : i64, scratch_operands = 0 : i64, tpu.core_type = #tpu.core_type<tc>, window_params = [{transform_indices = @transform_0, window_bounds = array<i64: 8, 8, 128>}, {pipeline_mode = #tpu.pipeline_mode<synchronous>, transform_indices = @transform_1, window_bounds = array<i64: 128, 128>}, {pipeline_mode = #tpu.pipeline_mode<synchronous>, transform_indices = @transform_2, window_bounds = array<i64: 128, 128>}, {pipeline_mode = #tpu.pipeline_mode<synchronous>, transform_indices = @transform_3, window_bounds = array<i64: 1, 128>}, {transform_indices = @transform_4, window_bounds = array<i64: 8, 128>}]} {
    %c0 = arith.constant 0 : index
    %c0_0 = arith.constant 0 : index
    %0 = vector.load %arg2[%c0, %c0_0] : memref<128x128xf32, #tpu.memory_space<vmem>>, vector<128x128xf32>
    %cst = arith.constant 0.000000e+00 : f32
    %1 = vector.broadcast %cst : f32 to vector<8x128xf32>
    %c0_1 = arith.constant 0 : index
    %c0_2 = arith.constant 0 : index
    %c0_3 = arith.constant 0 : index
    %2 = vector.load %arg1[%c0_1, %c0_2, %c0_3] : memref<8x8x128xf32, #tpu.memory_space<vmem>>, vector<8x8x128xf32>
    %3 = vector.extract_strided_slice %2 {offsets = [0, 0, 0], sizes = [1, 8, 128], strides = [1, 1, 1]} : vector<8x8x128xf32> to vector<1x8x128xf32>
    %4 = vector.shape_cast %3 : vector<1x8x128xf32> to vector<8x128xf32>
    %cst_4 = arith.constant dense<0.000000e+00> : vector<8x128xf32>
    %5 = tpu.matmul %1, %0, %cst_4 {dimension_numbers = #tpu.dot_dimension_numbers<[1], [0], [0], [1], [0, 0, 1, 1], [], []>} : vector<8x128xf32>, vector<128x128xf32>, vector<8x128xf32> -> vector<8x128xf32>
    %6 = arith.addf %4, %5 : vector<8x128xf32>
    %7 = math.tanh %6 : vector<8x128xf32>
    %8 = vector.extract_strided_slice %2 {offsets = [1, 0, 0], sizes = [1, 8, 128], strides = [1, 1, 1]} : vector<8x8x128xf32> to vector<1x8x128xf32>
    %9 = vector.shape_cast %8 : vector<1x8x128xf32> to vector<8x128xf32>
    %cst_5 = arith.constant dense<0.000000e+00> : vector<8x128xf32>
    %10 = tpu.matmul %7, %0, %cst_5 {dimension_numbers = #tpu.dot_dimension_numbers<[1], [0], [0], [1], [0, 0, 1, 1], [], []>} : vector<8x128xf32>, vector<128x128xf32>, vector<8x128xf32> -> vector<8x128xf32>
    %11 = arith.addf %9, %10 : vector<8x128xf32>
    %12 = math.tanh %11 : vector<8x128xf32>
    %13 = vector.extract_strided_slice %2 {offsets = [2, 0, 0], sizes = [1, 8, 128], strides = [1, 1, 1]} : vector<8x8x128xf32> to vector<1x8x128xf32>
    %14 = vector.shape_cast %13 : vector<1x8x128xf32> to vector<8x128xf32>
    %cst_6 = arith.constant dense<0.000000e+00> : vector<8x128xf32>
    %15 = tpu.matmul %12, %0, %cst_6 {dimension_numbers = #tpu.dot_dimension_numbers<[1], [0], [0], [1], [0, 0, 1, 1], [], []>} : vector<8x128xf32>, vector<128x128xf32>, vector<8x128xf32> -> vector<8x128xf32>
    %16 = arith.addf %14, %15 : vector<8x128xf32>
    %17 = math.tanh %16 : vector<8x128xf32>
    %18 = vector.extract_strided_slice %2 {offsets = [3, 0, 0], sizes = [1, 8, 128], strides = [1, 1, 1]} : vector<8x8x128xf32> to vector<1x8x128xf32>
    %19 = vector.shape_cast %18 : vector<1x8x128xf32> to vector<8x128xf32>
    %cst_7 = arith.constant dense<0.000000e+00> : vector<8x128xf32>
    %20 = tpu.matmul %17, %0, %cst_7 {dimension_numbers = #tpu.dot_dimension_numbers<[1], [0], [0], [1], [0, 0, 1, 1], [], []>} : vector<8x128xf32>, vector<128x128xf32>, vector<8x128xf32> -> vector<8x128xf32>
    %21 = arith.addf %19, %20 : vector<8x128xf32>
    %22 = math.tanh %21 : vector<8x128xf32>
    %23 = vector.extract_strided_slice %2 {offsets = [4, 0, 0], sizes = [1, 8, 128], strides = [1, 1, 1]} : vector<8x8x128xf32> to vector<1x8x128xf32>
    %24 = vector.shape_cast %23 : vector<1x8x128xf32> to vector<8x128xf32>
    %cst_8 = arith.constant dense<0.000000e+00> : vector<8x128xf32>
    %25 = tpu.matmul %22, %0, %cst_8 {dimension_numbers = #tpu.dot_dimension_numbers<[1], [0], [0], [1], [0, 0, 1, 1], [], []>} : vector<8x128xf32>, vector<128x128xf32>, vector<8x128xf32> -> vector<8x128xf32>
    %26 = arith.addf %24, %25 : vector<8x128xf32>
    %27 = math.tanh %26 : vector<8x128xf32>
    %28 = vector.extract_strided_slice %2 {offsets = [5, 0, 0], sizes = [1, 8, 128], strides = [1, 1, 1]} : vector<8x8x128xf32> to vector<1x8x128xf32>
    %29 = vector.shape_cast %28 : vector<1x8x128xf32> to vector<8x128xf32>
    %cst_9 = arith.constant dense<0.000000e+00> : vector<8x128xf32>
    %30 = tpu.matmul %27, %0, %cst_9 {dimension_numbers = #tpu.dot_dimension_numbers<[1], [0], [0], [1], [0, 0, 1, 1], [], []>} : vector<8x128xf32>, vector<128x128xf32>, vector<8x128xf32> -> vector<8x128xf32>
    %31 = arith.addf %29, %30 : vector<8x128xf32>
    %32 = math.tanh %31 : vector<8x128xf32>
    %33 = vector.extract_strided_slice %2 {offsets = [6, 0, 0], sizes = [1, 8, 128], strides = [1, 1, 1]} : vector<8x8x128xf32> to vector<1x8x128xf32>
    %34 = vector.shape_cast %33 : vector<1x8x128xf32> to vector<8x128xf32>
    %cst_10 = arith.constant dense<0.000000e+00> : vector<8x128xf32>
    %35 = tpu.matmul %32, %0, %cst_10 {dimension_numbers = #tpu.dot_dimension_numbers<[1], [0], [0], [1], [0, 0, 1, 1], [], []>} : vector<8x128xf32>, vector<128x128xf32>, vector<8x128xf32> -> vector<8x128xf32>
    %36 = arith.addf %34, %35 : vector<8x128xf32>
    %37 = math.tanh %36 : vector<8x128xf32>
    %38 = vector.extract_strided_slice %2 {offsets = [7, 0, 0], sizes = [1, 8, 128], strides = [1, 1, 1]} : vector<8x8x128xf32> to vector<1x8x128xf32>
    %39 = vector.shape_cast %38 : vector<1x8x128xf32> to vector<8x128xf32>
    %cst_11 = arith.constant dense<0.000000e+00> : vector<8x128xf32>
    %40 = tpu.matmul %37, %0, %cst_11 {dimension_numbers = #tpu.dot_dimension_numbers<[1], [0], [0], [1], [0, 0, 1, 1], [], []>} : vector<8x128xf32>, vector<128x128xf32>, vector<8x128xf32> -> vector<8x128xf32>
    %41 = arith.addf %39, %40 : vector<8x128xf32>
    %42 = math.tanh %41 : vector<8x128xf32>
    %c0_12 = arith.constant 0 : index
    %c0_13 = arith.constant 0 : index
    %43 = vector.load %arg3[%c0_12, %c0_13] : memref<128x128xf32, #tpu.memory_space<vmem>>, vector<128x128xf32>
    %cst_14 = arith.constant dense<0.000000e+00> : vector<8x128xf32>
    %44 = tpu.matmul %42, %43, %cst_14 {dimension_numbers = #tpu.dot_dimension_numbers<[1], [0], [0], [1], [0, 0, 1, 1], [], []>} : vector<8x128xf32>, vector<128x128xf32>, vector<8x128xf32> -> vector<8x128xf32>
    %c0_15 = arith.constant 0 : index
    %c0_16 = arith.constant 0 : index
    %45 = vector.load %arg4[%c0_15, %c0_16] : memref<1x128xf32, #tpu.memory_space<vmem>>, vector<1x128xf32>
    %46 = vector.broadcast %45 : vector<1x128xf32> to vector<8x128xf32>
    %47 = arith.addf %44, %46 : vector<8x128xf32>
    %c0_17 = arith.constant 0 : index
    %c0_18 = arith.constant 0 : index
    %48 = vector.load %arg5[%c0_17, %c0_18] : memref<8x128xf32, #tpu.memory_space<vmem>>, vector<8x128xf32>
    tpu.vector_store %arg5[%c0_17, %c0_18], %47 {strides = array<i32>} : memref<8x128xf32, #tpu.memory_space<vmem>>, vector<8x128xf32>,
    return
  }
  func.func @transform_0(%arg0: i32) -> (i32, i32, i32) {
    %c0_i32 = arith.constant 0 : i32
    %c0_i32_0 = arith.constant 0 : i32
    %c0_i32_1 = arith.constant 0 : i32
    return %c0_i32, %arg0, %c0_i32_0 : i32, i32, i32
  }
  func.func @transform_1(%arg0: i32) -> (i32, i32) {
    %c0_i32 = arith.constant 0 : i32
    %c0_i32_0 = arith.constant 0 : i32
    %c0_i32_1 = arith.constant 0 : i32
    return %c0_i32, %c0_i32_0 : i32, i32
  }
  func.func @transform_2(%arg0: i32) -> (i32, i32) {
    %c0_i32 = arith.constant 0 : i32
    %c0_i32_0 = arith.constant 0 : i32
    %c0_i32_1 = arith.constant 0 : i32
    return %c0_i32, %c0_i32_0 : i32, i32
  }
  func.func @transform_3(%arg0: i32) -> (i32, i32) {
    %c0_i32 = arith.constant 0 : i32
    %c0_i32_0 = arith.constant 0 : i32
    %c0_i32_1 = arith.constant 0 : i32
    return %c0_i32, %c0_i32_0 : i32, i32
  }
  func.func @transform_4(%arg0: i32) -> (i32, i32) {
    %c0_i32 = arith.constant 0 : i32
    %c0_i32_0 = arith.constant 0 : i32
    return %arg0, %c0_i32 : i32, i32
  }
}

</mosaic_0001>

<llo_original>
// kernel: forward.1
$region0: #{forward.1}
  #allocation0 [shape = 'u32[]', space=smem, size = 0x4, offset = 0x4, fixed_abs, tag = 'smem constant byte address 0x4 - core index']
  #allocation1 [shape = 'u32[144,128]{1,0:T(1,128)}', space=vmem, size = 0x12000, scoped, tag = 'internal scratch']
  %s0 = inlined_call_operand.vmem [shape: f32[8,8,128], index: 0, kind: input, shape index: {}]
  %s1 = inlined_call_operand.hbm [shape: f32[128,128], index: 1, kind: input, shape index: {}]
  %s2 = inlined_call_operand.vmem [shape: f32[128,128], index: 2, kind: input, shape index: {}]
  %s3 = inlined_call_operand.vmem [shape: f32[1,128], index: 3, kind: input, shape index: {}]
  %s4 = inlined_call_operand.vmem [shape: f32[8,128], index: 4, kind: output, shape index: {}]
  %s5 = sld [smem:[#allocation0]]
  $region30: #{forward.1} parent=0
    _
  %s7 = ssub.s32 1, %s5
  %s8 = scalar_select 0, %s7, %s5
  $region1: #{forward.1} parent=0
    #allocation2 [shape = 'u8[65536]{0}', space=vmem, size = 0x10000, scoped, tag = 'input window, operand 1, single buffered']
    #allocation3 [shape = 's32[1]{0}', space=sflag, size = 0x4, scoped, tag = 'scoped memory for forward.1']
    %9 = vsyncpa [#allocation3], 0
    // Predicated region
    $region2: #{forward.1} parent=1 // pred_check
      _
    $region3: #{forward.1} parent=1 // pred_check_branch
      %11 = sbr.rel (0) target = $region5
    $region4: #{forward.1} parent=1 // pred_region
      _
    $region5: #{forward.1} parent=1 // pred_fallthru
      _
    // Predicated region
    $region6: #{forward.1} parent=1 // pred_check
      _
    $region7: #{forward.1} parent=1 // pred_check_branch
      %13 = sbr.rel (0) target = $region9
    $region8: #{forward.1} parent=1 // pred_region
      %s15 = ssub.s32 2048, 2048
      %16 = vsyncadd [#allocation3], %s15
      %s17 = sshll.u32 [#allocation2], 4
      %s18 = int_to_ptr.vmem [resolvable:$true] %s17
      %23 = dma.hbm_to_vmem [thread:$0]  %s1, 2048, %s18, [#allocation3], 128, 128, 8
    $region9: #{forward.1} parent=1 // pred_fallthru
      _
    // Predicated region
    $region10: #{forward.1} parent=1 // pred_check
      _
    $region11: #{forward.1} parent=1 // pred_check_branch
      %25 = sbr.rel (0) target = $region13
    $region12: #{forward.1} parent=1 // pred_region
      _
    $region13: #{forward.1} parent=1 // pred_fallthru
      _
    // Predicated region
    $region14: #{forward.1} parent=1 // pred_check
      _
    $region15: #{forward.1} parent=1 // pred_check_branch
      %27 = sbr.rel (0) target = $region17
    $region16: #{forward.1} parent=1 // pred_region
      _
    $region17: #{forward.1} parent=1 // pred_fallthru
      _
    // Predicated region
    $region18: #{forward.1} parent=1 // pred_check
      _
    $region19: #{forward.1} parent=1 // pred_check_branch
      %29 = sbr.rel (0) target = $region21
    $region20: #{forward.1} parent=1 // pred_region
      %30 = dma.done [#allocation3], 2048
    $region21: #{forward.1} parent=1 // pred_fallthru
      _
    %v31 = vld [vmem:[#allocation2] sm:$0xff]
    %v32 = vld [vmem:[#allocation2 + $0x8] sm:$0xff]
    %v33 = vld [vmem:[#allocation2 + $0x10] sm:$0xff]
    %v34 = vld [vmem:[#allocation2 + $0x18] sm:$0xff]
    %v35 = vld [vmem:[#allocation2 + $0x20] sm:$0xff]
    %v36 = vld [vmem:[#allocation2 + $0x28] sm:$0xff]
    %v37 = vld [vmem:[#allocation2 + $0x30] sm:$0xff]
    %v38 = vld [vmem:[#allocation2 + $0x38] sm:$0xff]
    %v39 = vld [vmem:[#allocation2 + $0x40] sm:$0xff]
    %v40 = vld [vmem:[#allocation2 + $0x48] sm:$0xff]
    %v41 = vld [vmem:[#allocation2 + $0x50] sm:$0xff]
    %v42 = vld [vmem:[#allocation2 + $0x58] sm:$0xff]
    %v43 = vld [vmem:[#allocation2 + $0x60] sm:$0xff]
    %v44 = vld [vmem:[#allocation2 + $0x68] sm:$0xff]
    %v45 = vld [vmem:[#allocation2 + $0x70] sm:$0xff]
    %v46 = vld [vmem:[#allocation2 + $0x78] sm:$0xff]
    %v47 = vld [vmem:[%s0] sm:$0xff]
    %v48 = vld [vmem:[%s0 + $0x8] sm:$0xff]
    %v49 = vld [vmem:[%s0 + $0x10] sm:$0xff]
    %v50 = vld [vmem:[%s0 + $0x18] sm:$0xff]
    %v51 = vld [vmem:[%s0 + $0x20] sm:$0xff]
    %v52 = vld [vmem:[%s0 + $0x28] sm:$0xff]
    %v53 = vld [vmem:[%s0 + $0x30] sm:$0xff]
    %v54 = vld [vmem:[%s0 + $0x38] sm:$0xff]
    %55 = vmatprep.subr.mxu0 0.0
    %56 = vmatpush1.msra.mxu0 %v31
    %57 = vmatprep.subr.mxu0 0.0
    %58 = vmatpush1.msra.mxu0 %v32
    %59 = vmatprep.subr.mxu0 0.0
    %60 = vmatpush1.msra.mxu0 %v33
    %61 = vmatprep.subr.mxu0 0.0
    %62 = vmatpush1.msra.mxu0 %v34
    %63 = vmatprep.subr.mxu0 0.0
    %64 = vmatpush1.msra.mxu0 %v35
    %65 = vmatprep.subr.mxu0 0.0
    %66 = vmatpush1.msra.mxu0 %v36
    %67 = vmatprep.subr.mxu0 0.0
    %68 = vmatpush1.msra.mxu0 %v37
    %69 = vmatprep.subr.mxu0 0.0
    %70 = vmatpush1.msra.mxu0 %v38
    %71 = vmatprep.subr.mxu0 0.0
    %72 = vmatpush1.msra.mxu0 %v39
    %73 = vmatprep.subr.mxu0 0.0
    %74 = vmatpush1.msra.mxu0 %v40
    %75 = vmatprep.subr.mxu0 0.0
    %76 = vmatpush1.msra.mxu0 %v41
    %77 = vmatprep.subr.mxu0 0.0
    %78 = vmatpush1.msra.mxu0 %v42
    %79 = vmatprep.subr.mxu0 0.0
    %80 = vmatpush1.msra.mxu0 %v43
    %81 = vmatprep.subr.mxu0 0.0
    %82 = vmatpush1.msra.mxu0 %v44
    %83 = vmatprep.subr.mxu0 0.0
    %84 = vmatpush1.msra.mxu0 %v45
    %85 = vmatprep.subr.mxu0 0.0
    %86 = vmatpush1.msra.mxu0 %v46
    %87 = vmatprep.subr.mxu0 0.0
    %88 = vmatpush1.msra.mxu0 0.0
    %89 = vmatprep.subr.mxu0 0.0
    %90 = vmatpush1.msra.mxu0 0.0
    %91 = vmatprep.subr.mxu0 0.0
    %92 = vmatpush1.msra.mxu0 0.0
    %93 = vmatprep.subr.mxu0 0.0
    %94 = vmatpush1.msra.mxu0 0.0
    %95 = vmatprep.subr.mxu0 0.0
    %96 = vmatpush1.msra.mxu0 0.0
    %97 = vmatprep.subr.mxu0 0.0
    %98 = vmatpush1.msra.mxu0 0.0
    %99 = vmatprep.subr.mxu0 0.0
    %100 = vmatpush1.msra.mxu0 0.0
    %101 = vmatprep.subr.mxu0 0.0
    %102 = vmatpush1.msra.mxu0 0.0
    %103 = vmatprep.subr.mxu0 0.0
    %104 = vmatpush1.msra.mxu0 0.0
    %105 = vmatprep.subr.mxu0 0.0
    %106 = vmatpush1.msra.mxu0 0.0
    %107 = vmatprep.subr.mxu0 0.0
    %108 = vmatpush1.msra.mxu0 0.0
    %109 = vmatprep.subr.mxu0 0.0
    %110 = vmatpush1.msra.mxu0 0.0
    %111 = vmatprep.subr.mxu0 0.0
    %112 = vmatpush1.msra.mxu0 0.0
    %113 = vmatprep.subr.mxu0 0.0
    %114 = vmatpush1.msra.mxu0 0.0
    %115 = vmatprep.subr.mxu0 0.0
    %116 = vmatpush1.msra.mxu0 0.0
    %117 = vmatprep.subr.mxu0 0.0
    %118 = vmatpush1.msra.mxu0 0.0
    %119 = vmatprep.mubr.f32.mxu0 0.0
    %120 = vmatmul.mubr.f32.gmra.mrb[0].mxu0 0.0
    %v121 = vpop.f32.mrb[0].mxu0
    %v122 = vadd.f32 0.0, %v121
    %v123 = vpop.f32.mrb[0].mxu0
    %124 = vdwg.mxu0
    %v125 = vadd.f32 %v47, %v122
    %v126 = vtanh.pop %v125
    %127 = vmatprep.subr.mxu0 0.0
    %128 = vmatpush1.msra.mxu0 %v31
    %129 = vmatprep.subr.mxu0 0.0
    %130 = vmatpush1.msra.mxu0 %v32
    %131 = vmatprep.subr.mxu0 0.0
    %132 = vmatpush1.msra.mxu0 %v33
    %133 = vmatprep.subr.mxu0 0.0
    %134 = vmatpush1.msra.mxu0 %v34
    %135 = vmatprep.subr.mxu0 0.0
    %136 = vmatpush1.msra.mxu0 %v35
    %137 = vmatprep.subr.mxu0 0.0
    %138 = vmatpush1.msra.mxu0 %v36
    %139 = vmatprep.subr.mxu0 0.0
    %140 = vmatpush1.msra.mxu0 %v37
    %141 = vmatprep.subr.mxu0 0.0
    %142 = vmatpush1.msra.mxu0 %v38
    %143 = vmatprep.subr.mxu0 0.0
    %144 = vmatpush1.msra.mxu0 %v39
    %145 = vmatprep.subr.mxu0 0.0
    %146 = vmatpush1.msra.mxu0 %v40
    %147 = vmatprep.subr.mxu0 0.0
    %148 = vmatpush1.msra.mxu0 %v41
    %149 = vmatprep.subr.mxu0 0.0
    %150 = vmatpush1.msra.mxu0 %v42
    %151 = vmatprep.subr.mxu0 0.0
    %152 = vmatpush1.msra.mxu0 %v43
    %153 = vmatprep.subr.mxu0 0.0
    %154 = vmatpush1.msra.mxu0 %v44
    %155 = vmatprep.subr.mxu0 0.0
    %156 = vmatpush1.msra.mxu0 %v45
    %157 = vmatprep.subr.mxu0 0.0
    %158 = vmatpush1.msra.mxu0 %v46
    %159 = vmatprep.subr.mxu0 0.0
    %160 = vmatpush1.msra.mxu0 0.0
    %161 = vmatprep.subr.mxu0 0.0
    %162 = vmatpush1.msra.mxu0 0.0
    %163 = vmatprep.subr.mxu0 0.0
    %164 = vmatpush1.msra.mxu0 0.0
    %165 = vmatprep.subr.mxu0 0.0
    %166 = vmatpush1.msra.mxu0 0.0
    %167 = vmatprep.subr.mxu0 0.0
    %168 = vmatpush1.msra.mxu0 0.0
    %169 = vmatprep.subr.mxu0 0.0
    %170 = vmatpush1.msra.mxu0 0.0
    %171 = vmatprep.subr.mxu0 0.0
    %172 = vmatpush1.msra.mxu0 0.0
    %173 = vmatprep.subr.mxu0 0.0
    %174 = vmatpush1.msra.mxu0 0.0
    %175 = vmatprep.subr.mxu0 0.0
    %176 = vmatpush1.msra.mxu0 0.0
    %177 = vmatprep.subr.mxu0 0.0
    %178 = vmatpush1.msra.mxu0 0.0
    %179 = vmatprep.subr.mxu0 0.0
    %180 = vmatpush1.msra.mxu0 0.0
    %181 = vmatprep.subr.mxu0 0.0
    %182 = vmatpush1.msra.mxu0 0.0
    %183 = vmatprep.subr.mxu0 0.0
    %184 = vmatpush1.msra.mxu0 0.0
    %185 = vmatprep.subr.mxu0 0.0
    %186 = vmatpush1.msra.mxu0 0.0
    %187 = vmatprep.subr.mxu0 0.0
    %188 = vmatpush1.msra.mxu0 0.0
    %189 = vmatprep.subr.mxu0 0.0
    %190 = vmatpush1.msra.mxu0 0.0
    %191 = vmatprep.mubr.f32.mxu0 0.0
    %192 = vmatmul.mubr.f32.gmra.mrb[0].mxu0 %v126
    %v193 = vpop.f32.mrb[0].mxu0
    %v194 = vadd.f32 0.0, %v193
    %v195 = vpop.f32.mrb[0].mxu0
    %196 = vdwg.mxu0
    %v197 = vadd.f32 %v48, %v194
    %v198 = vtanh.pop %v197
    %199 = vmatprep.subr.mxu0 0.0
    %200 = vmatpush1.msra.mxu0 %v31
    %201 = vmatprep.subr.mxu0 0.0
    %202 = vmatpush1.msra.mxu0 %v32
    %203 = vmatprep.subr.mxu0 0.0
    %204 = vmatpush1.msra.mxu0 %v33
    %205 = vmatprep.subr.mxu0 0.0
    %206 = vmatpush1.msra.mxu0 %v34
    %207 = vmatprep.subr.mxu0 0.0
    %208 = vmatpush1.msra.mxu0 %v35
    %209 = vmatprep.subr.mxu0 0.0
    %210 = vmatpush1.msra.mxu0 %v36
    %211 = vmatprep.subr.mxu0 0.0
    %212 = vmatpush1.msra.mxu0 %v37
    %213 = vmatprep.subr.mxu0 0.0
    %214 = vmatpush1.msra.mxu0 %v38
    %215 = vmatprep.subr.mxu0 0.0
    %216 = vmatpush1.msra.mxu0 %v39
    %217 = vmatprep.subr.mxu0 0.0
    %218 = vmatpush1.msra.mxu0 %v40
    %219 = vmatprep.subr.mxu0 0.0
    %220 = vmatpush1.msra.mxu0 %v41
    %221 = vmatprep.subr.mxu0 0.0
    %222 = vmatpush1.msra.mxu0 %v42
    %223 = vmatprep.subr.mxu0 0.0
    %224 = vmatpush1.msra.mxu0 %v43
    %225 = vmatprep.subr.mxu0 0.0
    %226 = vmatpush1.msra.mxu0 %v44
    %227 = vmatprep.subr.mxu0 0.0
    %228 = vmatpush1.msra.mxu0 %v45
    %229 = vmatprep.subr.mxu0 0.0
    %230 = vmatpush1.msra.mxu0 %v46
    %231 = vmatprep.subr.mxu0 0.0
    %232 = vmatpush1.msra.mxu0 0.0
    %233 = vmatprep.subr.mxu0 0.0
    %234 = vmatpush1.msra.mxu0 0.0
    %235 = vmatprep.subr.mxu0 0.0
    %236 = vmatpush1.msra.mxu0 0.0
    %237 = vmatprep.subr.mxu0 0.0
    %238 = vmatpush1.msra.mxu0 0.0
    %239 = vmatprep.subr.mxu0 0.0
    %240 = vmatpush1.msra.mxu0 0.0
    %241 = vmatprep.subr.mxu0 0.0
    %242 = vmatpush1.msra.mxu0 0.0
    %243 = vmatprep.subr.mxu0 0.0
    %244 = vmatpush1.msra.mxu0 0.0
    %245 = vmatprep.subr.mxu0 0.0
    %246 = vmatpush1.msra.mxu0 0.0
    %247 = vmatprep.subr.mxu0 0.0
    %248 = vmatpush1.msra.mxu0 0.0
    %249 = vmatprep.subr.mxu0 0.0
    %250 = vmatpush1.msra.mxu0 0.0
    %251 = vmatprep.subr.mxu0 0.0
    %252 = vmatpush1.msra.mxu0 0.0
    %253 = vmatprep.subr.mxu0 0.0
    %254 = vmatpush1.msra.mxu0 0.0
    %255 = vmatprep.subr.mxu0 0.0
    %256 = vmatpush1.msra.mxu0 0.0
    %257 = vmatprep.subr.mxu0 0.0
    %258 = vmatpush1.msra.mxu0 0.0
    %259 = vmatprep.subr.mxu0 0.0
    %260 = vmatpush1.msra.mxu0 0.0
    %261 = vmatprep.subr.mxu0 0.0
    %262 = vmatpush1.msra.mxu0 0.0
    %263 = vmatprep.mubr.f32.mxu0 0.0
    %264 = vmatmul.mubr.f32.gmra.mrb[0].mxu0 %v198
    %v265 = vpop.f32.mrb[0].mxu0
    %v266 = vadd.f32 0.0, %v265
    %v267 = vpop.f32.mrb[0].mxu0
    %268 = vdwg.mxu0
    %v269 = vadd.f32 %v49, %v266
    %v270 = vtanh.pop %v269
    %271 = vmatprep.subr.mxu0 0.0
    %272 = vmatpush1.msra.mxu0 %v31
    %273 = vmatprep.subr.mxu0 0.0
    %274 = vmatpush1.msra.mxu0 %v32
    %275 = vmatprep.subr.mxu0 0.0
    %276 = vmatpush1.msra.mxu0 %v33
    %277 = vmatprep.subr.mxu0 0.0
    %278 = vmatpush1.msra.mxu0 %v34
    %279 = vmatprep.subr.mxu0 0.0
    %280 = vmatpush1.msra.mxu0 %v35
    %281 = vmatprep.subr.mxu0 0.0
    %282 = vmatpush1.msra.mxu0 %v36
    %283 = vmatprep.subr.mxu0 0.0
    %284 = vmatpush1.msra.mxu0 %v37
    %285 = vmatprep.subr.mxu0 0.0
    %286 = vmatpush1.msra.mxu0 %v38
    %287 = vmatprep.subr.mxu0 0.0
    %288 = vmatpush1.msra.mxu0 %v39
    %289 = vmatprep.subr.mxu0 0.0
    %290 = vmatpush1.msra.mxu0 %v40
    %291 = vmatprep.subr.mxu0 0.0
    %292 = vmatpush1.msra.mxu0 %v41
    %293 = vmatprep.subr.mxu0 0.0
    %294 = vmatpush1.msra.mxu0 %v42
    %295 = vmatprep.subr.mxu0 0.0
    %296 = vmatpush1.msra.mxu0 %v43
    %297 = vmatprep.subr.mxu0 0.0
    %298 = vmatpush1.msra.mxu0 %v44
    %299 = vmatprep.subr.mxu0 0.0
    %300 = vmatpush1.msra.mxu0 %v45
    %301 = vmatprep.subr.mxu0 0.0
    %302 = vmatpush1.msra.mxu0 %v46
    %303 = vmatprep.subr.mxu0 0.0
    %304 = vmatpush1.msra.mxu0 0.0
    %305 = vmatprep.subr.mxu0 0.0
    %306 = vmatpush1.msra.mxu0 0.0
    %307 = vmatprep.subr.mxu0 0.0
    %308 = vmatpush1.msra.mxu0 0.0
    %309 = vmatprep.subr.mxu0 0.0
    %310 = vmatpush1.msra.mxu0 0.0
    %311 = vmatprep.subr.mxu0 0.0
    %312 = vmatpush1.msra.mxu0 0.0
    %313 = vmatprep.subr.mxu0 0.0
    %314 = vmatpush1.msra.mxu0 0.0
    %315 = vmatprep.subr.mxu0 0.0
    %316 = vmatpush1.msra.mxu0 0.0
    %317 = vmatprep.subr.mxu0 0.0
    %318 = vmatpush1.msra.mxu0 0.0
    %319 = vmatprep.subr.mxu0 0.0
    %320 = vmatpush1.msra.mxu0 0.0
    %321 = vmatprep.subr.mxu0 0.0
    %322 = vmatpush1.msra.mxu0 0.0
    %323 = vmatprep.subr.mxu0 0.0
    %324 = vmatpush1.msra.mxu0 0.0
    %325 = vmatprep.subr.mxu0 0.0
    %326 = vmatpush1.msra.mxu0 0.0
    %327 = vmatprep.subr.mxu0 0.0
    %328 = vmatpush1.msra.mxu0 0.0
    %329 = vmatprep.subr.mxu0 0.0
    %330 = vmatpush1.msra.mxu0 0.0
    %331 = vmatprep.subr.mxu0 0.0
    %332 = vmatpush1.msra.mxu0 0.0
    %333 = vmatprep.subr.mxu0 0.0
    %334 = vmatpush1.msra.mxu0 0.0
    %335 = vmatprep.mubr.f32.mxu0 0.0
    %336 = vmatmul.mubr.f32.gmra.mrb[0].mxu0 %v270
    %v337 = vpop.f32.mrb[0].mxu0
    %v338 = vadd.f32 0.0, %v337
    %v339 = vpop.f32.mrb[0].mxu0
    %340 = vdwg.mxu0
    %v341 = vadd.f32 %v50, %v338
    %v342 = vtanh.pop %v341
    %343 = vmatprep.subr.mxu0 0.0
    %344 = vmatpush1.msra.mxu0 %v31
    %345 = vmatprep.subr.mxu0 0.0
    %346 = vmatpush1.msra.mxu0 %v32
    %347 = vmatprep.subr.mxu0 0.0
    %348 = vmatpush1.msra.mxu0 %v33
    %349 = vmatprep.subr.mxu0 0.0
    %350 = vmatpush1.msra.mxu0 %v34
    %351 = vmatprep.subr.mxu0 0.0
    %352 = vmatpush1.msra.mxu0 %v35
    %353 = vmatprep.subr.mxu0 0.0
    %354 = vmatpush1.msra.mxu0 %v36
    %355 = vmatprep.subr.mxu0 0.0
    %356 = vmatpush1.msra.mxu0 %v37
    %357 = vmatprep.subr.mxu0 0.0
    %358 = vmatpush1.msra.mxu0 %v38
    %359 = vmatprep.subr.mxu0 0.0
    %360 = vmatpush1.msra.mxu0 %v39
    %361 = vmatprep.subr.mxu0 0.0
    %362 = vmatpush1.msra.mxu0 %v40
    %363 = vmatprep.subr.mxu0 0.0
    %364 = vmatpush1.msra.mxu0 %v41
    %365 = vmatprep.subr.mxu0 0.0
    %366 = vmatpush1.msra.mxu0 %v42
    %367 = vmatprep.subr.mxu0 0.0
    %368 = vmatpush1.msra.mxu0 %v43
    %369 = vmatprep.subr.mxu0 0.0
    %370 = vmatpush1.msra.mxu0 %v44
    %371 = vmatprep.subr.mxu0 0.0
    %372 = vmatpush1.msra.mxu0 %v45
    %373 = vmatprep.subr.mxu0 0.0
    %374 = vmatpush1.msra.mxu0 %v46
    %375 = vmatprep.subr.mxu0 0.0
    %376 = vmatpush1.msra.mxu0 0.0
    %377 = vmatprep.subr.mxu0 0.0
    %378 = vmatpush1.msra.mxu0 0.0
    %379 = vmatprep.subr.mxu0 0.0
    %380 = vmatpush1.msra.mxu0 0.0
    %381 = vmatprep.subr.mxu0 0.0
    %382 = vmatpush1.msra.mxu0 0.0
    %383 = vmatprep.subr.mxu0 0.0
    %384 = vmatpush1.msra.mxu0 0.0
    %385 = vmatprep.subr.mxu0 0.0
    %386 = vmatpush1.msra.mxu0 0.0
    %387 = vmatprep.subr.mxu0 0.0
    %388 = vmatpush1.msra.mxu0 0.0
    %389 = vmatprep.subr.mxu0 0.0
    %390 = vmatpush1.msra.mxu0 0.0
    %391 = vmatprep.subr.mxu0 0.0
    %392 = vmatpush1.msra.mxu0 0.0
    %393 = vmatprep.subr.mxu0 0.0
    %394 = vmatpush1.msra.mxu0 0.0
    %395 = vmatprep.subr.mxu0 0.0
    %396 = vmatpush1.msra.mxu0 0.0
    %397 = vmatprep.subr.mxu0 0.0
    %398 = vmatpush1.msra.mxu0 0.0
    %399 = vmatprep.subr.mxu0 0.0
    %400 = vmatpush1.msra.mxu0 0.0
    %401 = vmatprep.subr.mxu0 0.0
    %402 = vmatpush1.msra.mxu0 0.0
    %403 = vmatprep.subr.mxu0 0.0
    %404 = vmatpush1.msra.mxu0 0.0
    %405 = vmatprep.subr.mxu0 0.0
    %406 = vmatpush1.msra.mxu0 0.0
    %407 = vmatprep.mubr.f32.mxu0 0.0
    %408 = vmatmul.mubr.f32.gmra.mrb[0].mxu0 %v342
    %v409 = vpop.f32.mrb[0].mxu0
    %v410 = vadd.f32 0.0, %v409
    %v411 = vpop.f32.mrb[0].mxu0
    %412 = vdwg.mxu0
    %v413 = vadd.f32 %v51, %v410
    %v414 = vtanh.pop %v413
    %415 = vmatprep.subr.mxu0 0.0
    %416 = vmatpush1.msra.mxu0 %v31
    %417 = vmatprep.subr.mxu0 0.0
    %418 = vmatpush1.msra.mxu0 %v32
    %419 = vmatprep.subr.mxu0 0.0
    %420 = vmatpush1.msra.mxu0 %v33
    %421 = vmatprep.subr.mxu0 0.0
    %422 = vmatpush1.msra.mxu0 %v34
    %423 = vmatprep.subr.mxu0 0.0
    %424 = vmatpush1.msra.mxu0 %v35
    %425 = vmatprep.subr.mxu0 0.0
    %426 = vmatpush1.msra.mxu0 %v36
    %427 = vmatprep.subr.mxu0 0.0
    %428 = vmatpush1.msra.mxu0 %v37
    %429 = vmatprep.subr.mxu0 0.0
    %430 = vmatpush1.msra.mxu0 %v38
    %431 = vmatprep.subr.mxu0 0.0
    %432 = vmatpush1.msra.mxu0 %v39
    %433 = vmatprep.subr.mxu0 0.0
    %434 = vmatpush1.msra.mxu0 %v40
    %435 = vmatprep.subr.mxu0 0.0
    %436 = vmatpush1.msra.mxu0 %v41
    %437 = vmatprep.subr.mxu0 0.0
    %438 = vmatpush1.msra.mxu0 %v42
    %439 = vmatprep.subr.mxu0 0.0
    %440 = vmatpush1.msra.mxu0 %v43
    %441 = vmatprep.subr.mxu0 0.0
    %442 = vmatpush1.msra.mxu0 %v44
    %443 = vmatprep.subr.mxu0 0.0
    %444 = vmatpush1.msra.mxu0 %v45
    %445 = vmatprep.subr.mxu0 0.0
    %446 = vmatpush1.msra.mxu0 %v46
    %447 = vmatprep.subr.mxu0 0.0
    %448 = vmatpush1.msra.mxu0 0.0
    %449 = vmatprep.subr.mxu0 0.0
    %450 = vmatpush1.msra.mxu0 0.0
    %451 = vmatprep.subr.mxu0 0.0
    %452 = vmatpush1.msra.mxu0 0.0
    %453 = vmatprep.subr.mxu0 0.0
    %454 = vmatpush1.msra.mxu0 0.0
    %455 = vmatprep.subr.mxu0 0.0
    %456 = vmatpush1.msra.mxu0 0.0
    %457 = vmatprep.subr.mxu0 0.0
    %458 = vmatpush1.msra.mxu0 0.0
    %459 = vmatprep.subr.mxu0 0.0
    %460 = vmatpush1.msra.mxu0 0.0
    %461 = vmatprep.subr.mxu0 0.0
    %462 = vmatpush1.msra.mxu0 0.0
    %463 = vmatprep.subr.mxu0 0.0
    %464 = vmatpush1.msra.mxu0 0.0
    %465 = vmatprep.subr.mxu0 0.0
    %466 = vmatpush1.msra.mxu0 0.0
    %467 = vmatprep.subr.mxu0 0.0
    %468 = vmatpush1.msra.mxu0 0.0
    %469 = vmatprep.subr.mxu0 0.0
    %470 = vmatpush1.msra.mxu0 0.0
    %471 = vmatprep.subr.mxu0 0.0
    %472 = vmatpush1.msra.mxu0 0.0
    %473 = vmatprep.subr.mxu0 0.0
    %474 = vmatpush1.msra.mxu0 0.0
    %475 = vmatprep.subr.mxu0 0.0
    %476 = vmatpush1.msra.mxu0 0.0
    %477 = vmatprep.subr.mxu0 0.0
    %478 = vmatpush1.msra.mxu0 0.0
    %479 = vmatprep.mubr.f32.mxu0 0.0
    %480 = vmatmul.mubr.f32.gmra.mrb[0].mxu0 %v414
    %v481 = vpop.f32.mrb[0].mxu0
    %v482 = vadd.f32 0.0, %v481
    %v483 = vpop.f32.mrb[0].mxu0
    %484 = vdwg.mxu0
    %v485 = vadd.f32 %v52, %v482
    %v486 = vtanh.pop %v485
    %487 = vmatprep.subr.mxu0 0.0
    %488 = vmatpush1.msra.mxu0 %v31
    %489 = vmatprep.subr.mxu0 0.0
    %490 = vmatpush1.msra.mxu0 %v32
    %491 = vmatprep.subr.mxu0 0.0
    %492 = vmatpush1.msra.mxu0 %v33
    %493 = vmatprep.subr.mxu0 0.0
    %494 = vmatpush1.msra.mxu0 %v34
    %495 = vmatprep.subr.mxu0 0.0
    %496 = vmatpush1.msra.mxu0 %v35
    %497 = vmatprep.subr.mxu0 0.0
    %498 = vmatpush1.msra.mxu0 %v36
    %499 = vmatprep.subr.mxu0 0.0
    %500 = vmatpush1.msra.mxu0 %v37
    %501 = vmatprep.subr.mxu0 0.0
    %502 = vmatpush1.msra.mxu0 %v38
    %503 = vmatprep.subr.mxu0 0.0
    %504 = vmatpush1.msra.mxu0 %v39
    %505 = vmatprep.subr.mxu0 0.0
    %506 = vmatpush1.msra.mxu0 %v40
    %507 = vmatprep.subr.mxu0 0.0
    %508 = vmatpush1.msra.mxu0 %v41
    %509 = vmatprep.subr.mxu0 0.0
    %510 = vmatpush1.msra.mxu0 %v42
    %511 = vmatprep.subr.mxu0 0.0
    %512 = vmatpush1.msra.mxu0 %v43
    %513 = vmatprep.subr.mxu0 0.0
    %514 = vmatpush1.msra.mxu0 %v44
    %515 = vmatprep.subr.mxu0 0.0
    %516 = vmatpush1.msra.mxu0 %v45
    %517 = vmatprep.subr.mxu0 0.0
    %518 = vmatpush1.msra.mxu0 %v46
    %519 = vmatprep.subr.mxu0 0.0
    %520 = vmatpush1.msra.mxu0 0.0
    %521 = vmatprep.subr.mxu0 0.0
    %522 = vmatpush1.msra.mxu0 0.0
    %523 = vmatprep.subr.mxu0 0.0
    %524 = vmatpush1.msra.mxu0 0.0
    %525 = vmatprep.subr.mxu0 0.0
    %526 = vmatpush1.msra.mxu0 0.0
    %527 = vmatprep.subr.mxu0 0.0
    %528 = vmatpush1.msra.mxu0 0.0
    %529 = vmatprep.subr.mxu0 0.0
    %530 = vmatpush1.msra.mxu0 0.0
    %531 = vmatprep.subr.mxu0 0.0
    %532 = vmatpush1.msra.mxu0 0.0
    %533 = vmatprep.subr.mxu0 0.0
    %534 = vmatpush1.msra.mxu0 0.0
    %535 = vmatprep.subr.mxu0 0.0
    %536 = vmatpush1.msra.mxu0 0.0
    %537 = vmatprep.subr.mxu0 0.0
    %538 = vmatpush1.msra.mxu0 0.0
    %539 = vmatprep.subr.mxu0 0.0
    %540 = vmatpush1.msra.mxu0 0.0
    %541 = vmatprep.subr.mxu0 0.0
    %542 = vmatpush1.msra.mxu0 0.0
    %543 = vmatprep.subr.mxu0 0.0
    %544 = vmatpush1.msra.mxu0 0.0
    %545 = vmatprep.subr.mxu0 0.0
    %546 = vmatpush1.msra.mxu0 0.0
    %547 = vmatprep.subr.mxu0 0.0
    %548 = vmatpush1.msra.mxu0 0.0
    %549 = vmatprep.subr.mxu0 0.0
    %550 = vmatpush1.msra.mxu0 0.0
    %551 = vmatprep.mubr.f32.mxu0 0.0
    %552 = vmatmul.mubr.f32.gmra.mrb[0].mxu0 %v486
    %v553 = vpop.f32.mrb[0].mxu0
    %v554 = vadd.f32 0.0, %v553
    %v555 = vpop.f32.mrb[0].mxu0
    %556 = vdwg.mxu0
    %v557 = vadd.f32 %v53, %v554
    %v558 = vtanh.pop %v557
    %559 = vmatprep.subr.mxu0 0.0
    %560 = vmatpush1.msra.mxu0 %v31
    %561 = vmatprep.subr.mxu0 0.0
    %562 = vmatpush1.msra.mxu0 %v32
    %563 = vmatprep.subr.mxu0 0.0
    %564 = vmatpush1.msra.mxu0 %v33
    %565 = vmatprep.subr.mxu0 0.0
    %566 = vmatpush1.msra.mxu0 %v34
    %567 = vmatprep.subr.mxu0 0.0
    %568 = vmatpush1.msra.mxu0 %v35
    %569 = vmatprep.subr.mxu0 0.0
    %570 = vmatpush1.msra.mxu0 %v36
    %571 = vmatprep.subr.mxu0 0.0
    %572 = vmatpush1.msra.mxu0 %v37
    %573 = vmatprep.subr.mxu0 0.0
    %574 = vmatpush1.msra.mxu0 %v38
    %575 = vmatprep.subr.mxu0 0.0
    %576 = vmatpush1.msra.mxu0 %v39
    %577 = vmatprep.subr.mxu0 0.0
    %578 = vmatpush1.msra.mxu0 %v40
    %579 = vmatprep.subr.mxu0 0.0
    %580 = vmatpush1.msra.mxu0 %v41
    %581 = vmatprep.subr.mxu0 0.0
    %582 = vmatpush1.msra.mxu0 %v42
    %583 = vmatprep.subr.mxu0 0.0
    %584 = vmatpush1.msra.mxu0 %v43
    %585 = vmatprep.subr.mxu0 0.0
    %586 = vmatpush1.msra.mxu0 %v44
    %587 = vmatprep.subr.mxu0 0.0
    %588 = vmatpush1.msra.mxu0 %v45
    %589 = vmatprep.subr.mxu0 0.0
    %590 = vmatpush1.msra.mxu0 %v46
    %591 = vmatprep.subr.mxu0 0.0
    %592 = vmatpush1.msra.mxu0 0.0
    %593 = vmatprep.subr.mxu0 0.0
    %594 = vmatpush1.msra.mxu0 0.0
    %595 = vmatprep.subr.mxu0 0.0
    %596 = vmatpush1.msra.mxu0 0.0
    %597 = vmatprep.subr.mxu0 0.0
    %598 = vmatpush1.msra.mxu0 0.0
    %599 = vmatprep.subr.mxu0 0.0
    %600 = vmatpush1.msra.mxu0 0.0
    %601 = vmatprep.subr.mxu0 0.0
    %602 = vmatpush1.msra.mxu0 0.0
    %603 = vmatprep.subr.mxu0 0.0
    %604 = vmatpush1.msra.mxu0 0.0
    %605 = vmatprep.subr.mxu0 0.0
    %606 = vmatpush1.msra.mxu0 0.0
    %607 = vmatprep.subr.mxu0 0.0
    %608 = vmatpush1.msra.mxu0 0.0
    %609 = vmatprep.subr.mxu0 0.0
    %610 = vmatpush1.msra.mxu0 0.0
    %611 = vmatprep.subr.mxu0 0.0
    %612 = vmatpush1.msra.mxu0 0.0
    %613 = vmatprep.subr.mxu0 0.0
    %614 = vmatpush1.msra.mxu0 0.0
    %615 = vmatprep.subr.mxu0 0.0
    %616 = vmatpush1.msra.mxu0 0.0
    %617 = vmatprep.subr.mxu0 0.0
    %618 = vmatpush1.msra.mxu0 0.0
    %619 = vmatprep.subr.mxu0 0.0
    %620 = vmatpush1.msra.mxu0 0.0
    %621 = vmatprep.subr.mxu0 0.0
    %622 = vmatpush1.msra.mxu0 0.0
    %623 = vmatprep.mubr.f32.mxu0 0.0
    %624 = vmatmul.mubr.f32.gmra.mrb[0].mxu0 %v558
    %v625 = vpop.f32.mrb[0].mxu0
    %v626 = vadd.f32 0.0, %v625
    %v627 = vpop.f32.mrb[0].mxu0
    %628 = vdwg.mxu0
    %v629 = vadd.f32 %v54, %v626
    %v630 = vtanh.pop %v629
    %v631 = vld [vmem:[%s2] sm:$0xff]
    %v632 = vld [vmem:[%s2 + $0x8] sm:$0xff]
    %v633 = vld [vmem:[%s2 + $0x10] sm:$0xff]
    %v634 = vld [vmem:[%s2 + $0x18] sm:$0xff]
    %v635 = vld [vmem:[%s2 + $0x20] sm:$0xff]
    %v636 = vld [vmem:[%s2 + $0x28] sm:$0xff]
    %v637 = vld [vmem:[%s2 + $0x30] sm:$0xff]
    %v638 = vld [vmem:[%s2 + $0x38] sm:$0xff]
    %v639 = vld [vmem:[%s2 + $0x40] sm:$0xff]
    %v640 = vld [vmem:[%s2 + $0x48] sm:$0xff]
    %v641 = vld [vmem:[%s2 + $0x50] sm:$0xff]
    %v642 = vld [vmem:[%s2 + $0x58] sm:$0xff]
    %v643 = vld [vmem:[%s2 + $0x60] sm:$0xff]
    %v644 = vld [vmem:[%s2 + $0x68] sm:$0xff]
    %v645 = vld [vmem:[%s2 + $0x70] sm:$0xff]
    %v646 = vld [vmem:[%s2 + $0x78] sm:$0xff]
    %v647 = vld [vmem:[%s3] sm:$0x1]
    %v649 = vlaneseq
    %v650 = vshrl.u32 %v649, 7
    %v651 = vsub.s32 0, %v650
    %v652 = vrot.slane %v647, %v651
    %654 = vmatprep.subr.mxu0 0.0
    %655 = vmatpush1.msra.mxu0 %v631
    %656 = vmatprep.subr.mxu0 0.0
    %657 = vmatpush1.msra.mxu0 %v632
    %658 = vmatprep.subr.mxu0 0.0
    %659 = vmatpush1.msra.mxu0 %v633
    %660 = vmatprep.subr.mxu0 0.0
    %661 = vmatpush1.msra.mxu0 %v634
    %662 = vmatprep.subr.mxu0 0.0
    %663 = vmatpush1.msra.mxu0 %v635
    %664 = vmatprep.subr.mxu0 0.0
    %665 = vmatpush1.msra.mxu0 %v636
    %666 = vmatprep.subr.mxu0 0.0
    %667 = vmatpush1.msra.mxu0 %v637
    %668 = vmatprep.subr.mxu0 0.0
    %669 = vmatpush1.msra.mxu0 %v638
    %670 = vmatprep.subr.mxu0 0.0
    %671 = vmatpush1.msra.mxu0 %v639
    %672 = vmatprep.subr.mxu0 0.0
    %673 = vmatpush1.msra.mxu0 %v640
    %674 = vmatprep.subr.mxu0 0.0
    %675 = vmatpush1.msra.mxu0 %v641
    %676 = vmatprep.subr.mxu0 0.0
    %677 = vmatpush1.msra.mxu0 %v642
    %678 = vmatprep.subr.mxu0 0.0
    %679 = vmatpush1.msra.mxu0 %v643
    %680 = vmatprep.subr.mxu0 0.0
    %681 = vmatpush1.msra.mxu0 %v644
    %682 = vmatprep.subr.mxu0 0.0
    %683 = vmatpush1.msra.mxu0 %v645
    %684 = vmatprep.subr.mxu0 0.0
    %685 = vmatpush1.msra.mxu0 %v646
    %686 = vmatprep.subr.mxu0 0.0
    %687 = vmatpush1.msra.mxu0 0.0
    %688 = vmatprep.subr.mxu0 0.0
    %689 = vmatpush1.msra.mxu0 0.0
    %690 = vmatprep.subr.mxu0 0.0
    %691 = vmatpush1.msra.mxu0 0.0
    %692 = vmatprep.subr.mxu0 0.0
    %693 = vmatpush1.msra.mxu0 0.0
    %694 = vmatprep.subr.mxu0 0.0
    %695 = vmatpush1.msra.mxu0 0.0
    %696 = vmatprep.subr.mxu0 0.0
    %697 = vmatpush1.msra.mxu0 0.0
    %698 = vmatprep.subr.mxu0 0.0
    %699 = vmatpush1.msra.mxu0 0.0
    %700 = vmatprep.subr.mxu0 0.0
    %701 = vmatpush1.msra.mxu0 0.0
    %702 = vmatprep.subr.mxu0 0.0
    %703 = vmatpush1.msra.mxu0 0.0
    %704 = vmatprep.subr.mxu0 0.0
    %705 = vmatpush1.msra.mxu0 0.0
    %706 = vmatprep.subr.mxu0 0.0
    %707 = vmatpush1.msra.mxu0 0.0
    %708 = vmatprep.subr.mxu0 0.0
    %709 = vmatpush1.msra.mxu0 0.0
    %710 = vmatprep.subr.mxu0 0.0
    %711 = vmatpush1.msra.mxu0 0.0
    %712 = vmatprep.subr.mxu0 0.0
    %713 = vmatpush1.msra.mxu0 0.0
    %714 = vmatprep.subr.mxu0 0.0
    %715 = vmatpush1.msra.mxu0 0.0
    %716 = vmatprep.subr.mxu0 0.0
    %717 = vmatpush1.msra.mxu0 0.0
    %718 = vmatprep.mubr.f32.mxu0 0.0
    %719 = vmatmul.mubr.f32.gmra.mrb[0].mxu0 %v630
    %v720 = vpop.f32.mrb[0].mxu0
    %v721 = vadd.f32 %v652, %v720
    %v722 = vpop.f32.mrb[0].mxu0
    %723 = vdwg.mxu0
    %724 = vst [vmem:[%s4] sm:$0xff] %v721
    // Predicated region
    $region22: #{forward.1} parent=1 // pred_check
      _
    $region23: #{forward.1} parent=1 // pred_check_branch
      %726 = sbr.rel (0) target = $region25
    $region24: #{forward.1} parent=1 // pred_region
      _
    $region25: #{forward.1} parent=1 // pred_fallthru
      _
    // Predicated region
    $region26: #{forward.1} parent=1 // pred_check
      _
    $region27: #{forward.1} parent=1 // pred_check_branch
      %728 = sbr.rel (0) target = $region29
    $region28: #{forward.1} parent=1 // pred_region
      _
    $region29: #{forward.1} parent=1 // pred_fallthru
      _
    %729 = vsyncpa [#allocation3], 1

</llo_original>
